<compile_context>
chip_gen: v5e
topology: v5e:2x2
jax: 0.10.0
libtpu: 0.0.40
codegen_flags: <defaults>
</compile_context>

<pallas_src>
import jax
import jax.numpy as jnp
from jax.experimental import pallas as pl
from jax.experimental.pallas import tpu as pltpu

_LANE = 128
_MAX_TILE_ROWS = 1024
# Keep 2 pipeline buffers x (in + out) blocks well under the smallest scoped
# VMEM default across generations (16 MiB on v5e, 32 MiB on v6e/v7x).
_BLOCK_VMEM_BUDGET_BYTES = 8 * 1024 * 1024
_VMEM_LIMIT_BYTES = 32 * 1024 * 1024


def _round_up(x: int, m: int) -> int:
    return ((x + m - 1) // m) * m


def _sublane_multiple(dtype) -> int:
    # f32 -> 8, bf16 -> 16, int8/fp8 -> 32 (sub-32-bit dtypes pack sublanes).
    itemsize = jnp.dtype(dtype).itemsize
    return max(8, 32 // max(itemsize, 1))


def _choose_tile_rows(n_rows: int, n_cols_padded: int, dtype) -> int:
    itemsize = jnp.dtype(dtype).itemsize
    sublane = _sublane_multiple(dtype)
    # 2 arrays (in + out) x 2 pipeline buffers each must fit the budget.
    bytes_per_row = 4 * n_cols_padded * itemsize
    tile = _BLOCK_VMEM_BUDGET_BYTES // max(bytes_per_row, 1)
    tile = max(sublane, (tile // sublane) * sublane)
    tile = min(tile, _MAX_TILE_ROWS)                # per-step overhead (~0.35us)
    tile = min(tile, _round_up(n_rows, sublane))    # is amortized well below this
    return tile


def _base_passthrough_kernel(x_ref, o_ref):
    # TODO(synk): AuemBaseModel.forward is abstract (raises NotImplementedError);
    # the base class defines no numerical transform, so this block is identity.
    # A concrete subclass replaces this body with its real forward math.
    o_ref[...] = x_ref[...]


@jax.jit
def _run_base_kernel(x_2d: jax.Array) -> jax.Array:
    """Run the pass-through kernel on a [R, C] slab, row-tiled & lane-dense."""
    R, C = x_2d.shape
    dtype = x_2d.dtype

    Cp = _round_up(C, _LANE)                  # lane-dense last dim
    tile_r = _choose_tile_rows(R, Cp, dtype)
    Rp = _round_up(R, tile_r)                 # every block full -> no masked stores

    needs_pad = (Rp != R) or (Cp != C)
    x_p = jnp.pad(x_2d, ((0, Rp - R), (0, Cp - C))) if needs_pad else x_2d

    y_p = pl.pallas_call(
        _base_passthrough_kernel,
        out_shape=jax.ShapeDtypeStruct((Rp, Cp), dtype),
        grid=(pl.cdiv(Rp, tile_r),),
        in_specs=[pl.BlockSpec((tile_r, Cp), lambda i: (i, 0))],
        out_specs=pl.BlockSpec((tile_r, Cp), lambda i: (i, 0)),
        # Identity may write in place when the producer is an intermediate of a
        # larger jit'd program (XLA inserts a copy when it cannot legally alias).
        input_output_aliases={0: 0},
        compiler_params=pltpu.CompilerParams(
            dimension_semantics=("parallel",),   # blocks independent: lets v7x
            vmem_limit_bytes=_VMEM_LIMIT_BYTES,  # shard across both TensorCores
        ),
    )(x_p)

    return y_p[:R, :C] if needs_pad else y_p


class AuemBaseModelPallas:
    """JAX/Pallas mirror of hearauem AuemBaseModel (abstract base)."""

    sample_rate = 22050
    embedding_size = 4096
    scene_embedding_size = embedding_size
    timestamp_embedding_size = embedding_size
    seed = 11
    epsilon = 1e-06

    def __init__(self):
        # Base class defines no parameters (nn.Module.__init__ only).
        pass

    # --- exact semantics of the reference forward: abstract -----------------
    def forward(self, x):
        raise NotImplementedError("Must implement as a child class.")

    @property
    def n_fft(self) -> int:
        raise NotImplementedError()

    @property
    def min_frame_size(self) -> int:
        return self.n_fft

    # TODO(synk): save()/load() are torch checkpoint file I/O (torch.save /
    # torch.load + model factory); no Pallas equivalent, out of scope.

    # --- demo path: what the Pallas plumbing of a child forward looks like ---
    def base_kernel_passthrough(self, x_nchw: jax.Array) -> jax.Array:
        B, C, H, W = x_nchw.shape
        x_2d = x_nchw.reshape(B * C, H * W)     # glue (plain JAX): lane-dense slab
        y_2d = _run_base_kernel(x_2d)           # Pallas hot path (identity)
        return y_2d.reshape(B, C, H, W)


if __name__ == "__main__":
    key = jax.random.PRNGKey(0)
    model = AuemBaseModelPallas()

    # Small NCHW input consistent with an audio-model spectrogram-ish shape.
    x = jax.random.normal(key, (2, 4, 16, 16), dtype=jnp.float32)
    y = jax.block_until_ready(model.base_kernel_passthrough(x))
    assert y.shape == x.shape
    assert jnp.allclose(y, x)

    # Ragged spatial dims (H*W % 128 != 0) exercise the pad-to-(sublane,128)
    # path that real spectrogram shapes hit once a subclass plugs in.
    x_odd = jax.random.normal(jax.random.PRNGKey(1), (2, 3, 10, 10), jnp.float32)
    y_odd = jax.block_until_ready(model.base_kernel_passthrough(x_odd))
    assert y_odd.shape == x_odd.shape
    assert jnp.allclose(y_odd, x_odd)

    # Verify the abstract-forward semantics are preserved.
    try:
        model.forward(x)
        raise AssertionError("forward should have raised NotImplementedError")
    except NotImplementedError:
        pass

    print("KERNEL_OK")
</pallas_src>

<mosaic_0001>
module attributes {stable_mosaic.version = 11 : i64} {
  func.func @_base_passthrough_kernel(%arg0: i32, %arg1: memref<8x256xf32, #tpu.memory_space<vmem>>, %arg2: memref<8x256xf32, #tpu.memory_space<vmem>>) attributes {dimension_semantics = [#tpu.dimension_semantics<parallel>], iteration_bounds = array<i64: 1>, scalar_prefetch = 0 : i64, scratch_operands = 0 : i64, tpu.core_type = #tpu.core_type<tc>, window_params = [{transform_indices = @transform_0, window_bounds = array<i64: 8, 256>}, {transform_indices = @transform_1, window_bounds = array<i64: 8, 256>}]} {
    %c0 = arith.constant 0 : index
    %c0_0 = arith.constant 0 : index
    %0 = vector.load %arg1[%c0, %c0_0] : memref<8x256xf32, #tpu.memory_space<vmem>>, vector<8x256xf32>
    %c0_1 = arith.constant 0 : index
    %c0_2 = arith.constant 0 : index
    %1 = vector.load %arg2[%c0_1, %c0_2] : memref<8x256xf32, #tpu.memory_space<vmem>>, vector<8x256xf32>
    tpu.vector_store %arg2[%c0_1, %c0_2], %0 {strides = array<i32>} : memref<8x256xf32, #tpu.memory_space<vmem>>, vector<8x256xf32>,
    return
  }
  func.func @transform_0(%arg0: i32) -> (i32, i32) {
    %c0_i32 = arith.constant 0 : i32
    %c0_i32_0 = arith.constant 0 : i32
    return %arg0, %c0_i32 : i32, i32
  }
  func.func @transform_1(%arg0: i32) -> (i32, i32) {
    %c0_i32 = arith.constant 0 : i32
    %c0_i32_0 = arith.constant 0 : i32
    return %arg0, %c0_i32 : i32, i32
  }
}

</mosaic_0001>

<llo_original>
// kernel: _run_base_kernel.1
$region0: #{_run_base_kernel.1}
  #allocation0 [shape = 'u32[]', space=smem, size = 0x4, offset = 0x4, fixed_abs, tag = 'smem constant byte address 0x4 - core index']
  #allocation1 [shape = 'u32[72,128]{1,0:T(1,128)}', space=vmem, size = 0x9000, scoped, tag = 'internal scratch']
  %s0 = inlined_call_operand.hbm [shape: f32[8,256], index: 0, kind: input, shape index: {}, may-alias: {0,1}]
  %s1 = inlined_call_operand.hbm [shape: f32[8,256], index: 1, kind: output, shape index: {}, may-alias: {0,1}]
  %s2 = sld [smem:[#allocation0]]
  $region18: #{_run_base_kernel.1} parent=0
    _
  %s4 = ssub.s32 1, %s2
  %s5 = scalar_select 0, %s4, %s2
  $region1: #{_run_base_kernel.1} parent=0
    #allocation2 [shape = 'u8[8192]{0}', space=vmem, size = 0x2000, scoped, tag = 'input window, operand 0, single buffered']
    #allocation3 [shape = 's32[1]{0}', space=sflag, size = 0x4, scoped, tag = 'scoped memory for _run_base_kernel.1']
    #allocation4 [shape = 's32[1]{0}', space=sflag, size = 0x4, scoped, tag = 'scoped memory for _run_base_kernel.1']
    #allocation5 [shape = 'u8[8192]{0}', space=vmem, size = 0x2000, scoped, tag = 'output window, operand 0, single buffered']
    %6 = vsyncpa [#allocation3], 0
    %7 = vsyncpa [#allocation4], 0
    // Predicated region
    $region2: #{_run_base_kernel.1} parent=1 // pred_check
      _
    $region3: #{_run_base_kernel.1} parent=1 // pred_check_branch
      %9 = sbr.rel (0) target = $region5
    $region4: #{_run_base_kernel.1} parent=1 // pred_region
      %11 = vsyncadd [#allocation3], 0
      %s13 = sshll.u32 %s0, 4
      %s14 = int_to_ptr.hbm [resolvable:$true] %s13
      %s15 = sshll.u32 [#allocation2], 4
      %s16 = int_to_ptr.vmem [resolvable:$true] %s15
      %18 = dma.hbm_to_vmem [thread:$0]  %s14, 256, %s16, [#allocation3]
    $region5: #{_run_base_kernel.1} parent=1 // pred_fallthru
      _
    // Predicated region
    $region6: #{_run_base_kernel.1} parent=1 // pred_check
      _
    $region7: #{_run_base_kernel.1} parent=1 // pred_check_branch
      %20 = sbr.rel (0) target = $region9
    $region8: #{_run_base_kernel.1} parent=1 // pred_region
      %22 = dma.done [#allocation3], 256
    $region9: #{_run_base_kernel.1} parent=1 // pred_fallthru
      _
    %v23 = vld [vmem:[#allocation2] sm:$0xff]
    %v24 = vld [vmem:[#allocation2 + $0x8] sm:$0xff]
    %25 = vst [vmem:[#allocation5] sm:$0xff] %v23
    %26 = vst [vmem:[#allocation5 + $0x8] sm:$0xff] %v24
    // Predicated region
    $region10: #{_run_base_kernel.1} parent=1 // pred_check
      _
    $region11: #{_run_base_kernel.1} parent=1 // pred_check_branch
      %28 = sbr.rel (0) target = $region13
    $region12: #{_run_base_kernel.1} parent=1 // pred_region
      %30 = vsyncadd [#allocation4], 0
      %s32 = sshll.u32 [#allocation5], 4
      %s33 = int_to_ptr.vmem [resolvable:$true] %s32
      %s34 = sshll.u32 %s1, 4
      %s35 = int_to_ptr.hbm [resolvable:$true] %s34
      %37 = dma.vmem_to_hbm [thread:$0]  %s33, 256, %s35, [#allocation4]
    $region13: #{_run_base_kernel.1} parent=1 // pred_fallthru
      _
    // Predicated region
    $region14: #{_run_base_kernel.1} parent=1 // pred_check
      _
    $region15: #{_run_base_kernel.1} parent=1 // pred_check_branch
      %39 = sbr.rel (0) target = $region17
    $region16: #{_run_base_kernel.1} parent=1 // pred_region
      %41 = dma.done [#allocation4], 256
    $region17: #{_run_base_kernel.1} parent=1 // pred_fallthru
      _
    %42 = vsyncpa [#allocation3], 1
    %43 = vsyncpa [#allocation4], 1

</llo_original>
